<compile_context>
chip_gen: v5e
topology: v5e:2x2
jax: 0.10.0
libtpu: 0.0.40
codegen_flags: <defaults>
</compile_context>

<pallas_src>
import jax
import jax.numpy as jnp
from jax.experimental import pallas as pl
from jax.experimental.pallas import tpu as pltpu

EPS = 1e-3
KERNEL_SIZE = 2
STRIDE = 2


def _conv_stats_kernel(xk_ref, wt_ref, sum_ref, ssq_ref):
    """Pass 1: per-output-channel sum(y) and sum(y*y), accumulated over spatial tiles."""
    st = pl.program_id(1)

    @pl.when(st == 0)
    def _init():
        sum_ref[...] = jnp.zeros_like(sum_ref)
        ssq_ref[...] = jnp.zeros_like(ssq_ref)

    # [Nf, K] @ [K, TS] -> [Nf, TS]   (MXU, f32 accumulation)
    y = jnp.dot(wt_ref[...], xk_ref[0], preferred_element_type=jnp.float32)
    # Lane (axis=-1) reductions -> [Nf, 1]
    sum_ref[0] += jnp.sum(y, axis=-1, keepdims=True)
    ssq_ref[0] += jnp.sum(y * y, axis=-1, keepdims=True)


def _conv_bn_relu_kernel(xk_ref, wt_ref, scale_ref, shift_ref, o_ref):
    """Pass 2: recompute conv, apply folded BatchNorm (scale/shift) + ReLU."""
    y = jnp.dot(wt_ref[...], xk_ref[0], preferred_element_type=jnp.float32)
    y = y * scale_ref[...] + shift_ref[...]          # per-row (per-channel) affine
    o_ref[0] = jnp.maximum(y, 0.0).astype(o_ref.dtype)


def _pick_spatial_tile(S):
    if S % 128 == 0:
        for cand in (2048, 1024, 512, 256, 128):
            if S % cand == 0:
                return cand
    return S   # full-dim block (small or non-128-aligned spatial extents)


@jax.jit
def example_network_forward(x_nchw, weight, gamma, beta):
    """x_nchw: [N, C, H, W] f32; weight: [2, 2, C, out] f32; gamma/beta: [out] f32."""
    N, C, H, W = x_nchw.shape
    Nf = weight.shape[-1]
    Ho, Wo = H // STRIDE, W // STRIDE
    S = Ho * Wo
    K = KERNEL_SIZE * KERNEL_SIZE * C
    M = N * S

    # --- glue: single fused cast + space-to-depth -> bf16 [N, K, S] ------------
    x_c = x_nchw[:, :, : Ho * STRIDE, : Wo * STRIDE]
    x6 = x_c.reshape(N, C, Ho, KERNEL_SIZE, Wo, KERNEL_SIZE)
    # (n, ki, kj, c, i, j): K ordered (ki, kj, c) to match the weight layout.
    xk = jnp.transpose(x6, (0, 3, 5, 1, 2, 4)).reshape(N, K, S).astype(jnp.bfloat16)
    # TODO(synk): DMA/in-kernel fusion of this stride-2 lane deinterleave would
    # drop one bf16-sized HBM pass over x; kept in the wrapper for robustness.

    wt = jnp.transpose(weight.reshape(K, Nf)).astype(jnp.bfloat16)   # [Nf, K]

    TS = _pick_spatial_tile(S)
    nst = S // TS

    # --- pass 1: batch statistics ----------------------------------------------
    sum_y, ssq_y = pl.pallas_call(
        _conv_stats_kernel,
        out_shape=(jax.ShapeDtypeStruct((N, Nf, 1), jnp.float32),
                   jax.ShapeDtypeStruct((N, Nf, 1), jnp.float32)),
        grid_spec=pl.GridSpec(
            grid=(N, nst),
            in_specs=[
                pl.BlockSpec((1, K, TS), lambda n, s: (n, 0, s)),
                pl.BlockSpec((Nf, K), lambda n, s: (0, 0)),
            ],
            out_specs=(pl.BlockSpec((1, Nf, 1), lambda n, s: (n, 0, 0)),
                       pl.BlockSpec((1, Nf, 1), lambda n, s: (n, 0, 0))),
        ),
        compiler_params=pltpu.CompilerParams(
            dimension_semantics=("parallel", "arbitrary")),
    )(xk, wt)

    # Tiny [Nf]-sized math in plain JAX: training-mode (biased) batch statistics.
    total = jnp.sum(sum_y[:, :, 0], axis=0)
    total2 = jnp.sum(ssq_y[:, :, 0], axis=0)
    mean = total / M
    var = total2 / M - mean * mean
    inv = jax.lax.rsqrt(var + EPS)
    scale = (gamma * inv).reshape(Nf, 1).astype(jnp.float32)
    shift = (beta - mean * gamma * inv).reshape(Nf, 1).astype(jnp.float32)
    # TODO(synk): running_mean/running_var buffer updates (momentum=0.01) are
    # stateful module side-effects and are not produced here.

    # --- pass 2: conv + BN + ReLU, written directly in NCHW ---------------------
    y = pl.pallas_call(
        _conv_bn_relu_kernel,
        out_shape=jax.ShapeDtypeStruct((N, Nf, S), jnp.float32),
        grid_spec=pl.GridSpec(
            grid=(N, nst),
            in_specs=[
                pl.BlockSpec((1, K, TS), lambda n, s: (n, 0, s)),
                pl.BlockSpec((Nf, K), lambda n, s: (0, 0)),
                pl.BlockSpec((Nf, 1), lambda n, s: (0, 0)),
                pl.BlockSpec((Nf, 1), lambda n, s: (0, 0)),
            ],
            out_specs=pl.BlockSpec((1, Nf, TS), lambda n, s: (n, 0, s)),
        ),
        compiler_params=pltpu.CompilerParams(
            dimension_semantics=("parallel", "parallel")),
    )(xk, wt, scale, shift)

    return y.reshape(N, Nf, Ho, Wo)


def _reference_forward(x, weight, gamma, beta):
    """Pure-JAX f32 reference with the same dense-grid semantics."""
    N, C, H, W = x.shape
    Nf = weight.shape[-1]
    Ho, Wo = H // STRIDE, W // STRIDE
    p = x[:, :, : Ho * STRIDE, : Wo * STRIDE].reshape(N, C, Ho, 2, Wo, 2)
    p = jnp.transpose(p, (0, 2, 4, 3, 5, 1)).reshape(N * Ho * Wo, 4 * C)
    y = p @ weight.reshape(4 * C, Nf)
    mean = jnp.mean(y, axis=0)
    var = jnp.mean((y - mean) ** 2, axis=0)
    yh = (y - mean) * jax.lax.rsqrt(var + EPS) * gamma + beta
    yh = jnp.maximum(yh, 0.0)
    return jnp.transpose(yh.reshape(N, Ho, Wo, Nf), (0, 3, 1, 2))


if __name__ == "__main__":
    # Small shapes consistent with the module: D=2, in_feat=4, out_feat=32.
    batch, in_feat, out_feat, H, W = 2, 4, 32, 16, 16

    key = jax.random.PRNGKey(0)
    kx, kw = jax.random.split(key)

    x = jax.random.normal(kx, (batch, in_feat, H, W), dtype=jnp.float32)
    # Minkowski conv weight: one [in, out] matrix per kernel offset (2^D = 4), bias=False.
    weight = jax.random.normal(
        kw, (KERNEL_SIZE, KERNEL_SIZE, in_feat, out_feat), dtype=jnp.float32) * 0.1
    gamma = jnp.ones((out_feat,), dtype=jnp.float32)   # fresh BatchNorm affine init
    beta = jnp.zeros((out_feat,), dtype=jnp.float32)

    out = example_network_forward(x, weight, gamma, beta)
    jax.block_until_ready(out)

    assert out.shape == (batch, out_feat, H // STRIDE, W // STRIDE)

    ref = _reference_forward(x, weight, gamma, beta)
    max_err = float(jnp.max(jnp.abs(out - ref)))
    assert max_err < 0.1, f"max abs error {max_err}"

    print("KERNEL_OK")
</pallas_src>

<mosaic_0001>
module attributes {stable_mosaic.version = 11 : i64} {
  func.func @_conv_stats_kernel(%arg0: i32, %arg1: i32, %arg2: memref<1x16x64xbf16, #tpu.memory_space<vmem>>, %arg3: memref<32x16xbf16, #tpu.memory_space<vmem>>, %arg4: memref<1x32x1xf32, #tpu.memory_space<vmem>>, %arg5: memref<1x32x1xf32, #tpu.memory_space<vmem>>) attributes {dimension_semantics = [#tpu.dimension_semantics<parallel>, #tpu.dimension_semantics<arbitrary>], iteration_bounds = array<i64: 2, 1>, scalar_prefetch = 0 : i64, scratch_operands = 0 : i64, tpu.core_type = #tpu.core_type<tc>, window_params = [{transform_indices = @transform_0, window_bounds = array<i64: 1, 16, 64>}, {pipeline_mode = #tpu.pipeline_mode<synchronous>, transform_indices = @transform_1, window_bounds = array<i64: 32, 16>}, {transform_indices = @transform_2, window_bounds = array<i64: 1, 32, 1>}, {transform_indices = @transform_3, window_bounds = array<i64: 1, 32, 1>}]} {
    %c0_i32 = arith.constant 0 : i32
    %0 = arith.cmpi eq, %arg1, %c0_i32 : i32
    %1 = arith.extui %0 : i1 to i32
    %c0_i32_0 = arith.constant 0 : i32
    %2 = arith.cmpi ne, %1, %c0_i32_0 : i32
    scf.if %2 {
      %cst_19 = arith.constant 0.000000e+00 : f32
      %24 = vector.broadcast %cst_19 : f32 to vector<1x32x1xf32>
      %c0_20 = arith.constant 0 : index
      %c0_21 = arith.constant 0 : index
      %c0_22 = arith.constant 0 : index
      %25 = vector.load %arg4[%c0_20, %c0_21, %c0_22] : memref<1x32x1xf32, #tpu.memory_space<vmem>>, vector<1x32x1xf32>
      tpu.vector_store %arg4[%c0_20, %c0_21, %c0_22], %24 {strides = array<i32>} : memref<1x32x1xf32, #tpu.memory_space<vmem>>, vector<1x32x1xf32>,
      %cst_23 = arith.constant 0.000000e+00 : f32
      %26 = vector.broadcast %cst_23 : f32 to vector<1x32x1xf32>
      %c0_24 = arith.constant 0 : index
      %c0_25 = arith.constant 0 : index
      %c0_26 = arith.constant 0 : index
      %27 = vector.load %arg5[%c0_24, %c0_25, %c0_26] : memref<1x32x1xf32, #tpu.memory_space<vmem>>, vector<1x32x1xf32>
      tpu.vector_store %arg5[%c0_24, %c0_25, %c0_26], %26 {strides = array<i32>} : memref<1x32x1xf32, #tpu.memory_space<vmem>>, vector<1x32x1xf32>,
    } else {
    }
    %c0 = arith.constant 0 : index
    %c0_1 = arith.constant 0 : index
    %3 = vector.load %arg3[%c0, %c0_1] : memref<32x16xbf16, #tpu.memory_space<vmem>>, vector<32x16xbf16>
    %c0_2 = arith.constant 0 : index
    %c0_3 = arith.constant 0 : index
    %c0_4 = arith.constant 0 : index
    %4 = vector.load %arg2[%c0_2, %c0_3, %c0_4] : memref<1x16x64xbf16, #tpu.memory_space<vmem>>, vector<1x16x64xbf16>
    %5 = vector.shape_cast %4 : vector<1x16x64xbf16> to vector<16x64xbf16>
    %cst = arith.constant dense<0.000000e+00> : vector<32x64xf32>
    %6 = tpu.matmul %3, %5, %cst {dimension_numbers = #tpu.dot_dimension_numbers<[1], [0], [0], [1], [0, 0, 1, 1], [], []>} : vector<32x16xbf16>, vector<16x64xbf16>, vector<32x64xf32> -> vector<32x64xf32>
    %c0_5 = arith.constant 0 : index
    %c0_6 = arith.constant 0 : index
    %c0_7 = arith.constant 0 : index
    %7 = vector.load %arg4[%c0_5, %c0_6, %c0_7] : memref<1x32x1xf32, #tpu.memory_space<vmem>>, vector<1x32x1xf32>
    %8 = vector.shape_cast %7 : vector<1x32x1xf32> to vector<32x1xf32>
    %cst_8 = arith.constant dense<0.000000e+00> : vector<32xf32>
    %9 = vector.multi_reduction <add>, %6, %cst_8 [1] : vector<32x64xf32> to vector<32xf32>
    %10 = vector.shape_cast %9 : vector<32xf32> to vector<32x1xf32>
    %11 = arith.addf %8, %10 : vector<32x1xf32>
    %c0_9 = arith.constant 0 : index
    %c0_10 = arith.constant 0 : index
    %c0_11 = arith.constant 0 : index
    %12 = vector.load %arg4[%c0_9, %c0_10, %c0_11] : memref<1x32x1xf32, #tpu.memory_space<vmem>>, vector<1x32x1xf32>
    %13 = vector.shape_cast %12 : vector<1x32x1xf32> to vector<32x1xf32>
    %14 = vector.shape_cast %11 : vector<32x1xf32> to vector<1x32x1xf32>
    tpu.vector_store %arg4[%c0_9, %c0_10, %c0_11], %14 {strides = array<i32>} : memref<1x32x1xf32, #tpu.memory_space<vmem>>, vector<1x32x1xf32>,
    %c0_12 = arith.constant 0 : index
    %c0_13 = arith.constant 0 : index
    %c0_14 = arith.constant 0 : index
    %15 = vector.load %arg5[%c0_12, %c0_13, %c0_14] : memref<1x32x1xf32, #tpu.memory_space<vmem>>, vector<1x32x1xf32>
    %16 = vector.shape_cast %15 : vector<1x32x1xf32> to vector<32x1xf32>
    %17 = arith.mulf %6, %6 : vector<32x64xf32>
    %cst_15 = arith.constant dense<0.000000e+00> : vector<32xf32>
    %18 = vector.multi_reduction <add>, %17, %cst_15 [1] : vector<32x64xf32> to vector<32xf32>
    %19 = vector.shape_cast %18 : vector<32xf32> to vector<32x1xf32>
    %20 = arith.addf %16, %19 : vector<32x1xf32>
    %c0_16 = arith.constant 0 : index
    %c0_17 = arith.constant 0 : index
    %c0_18 = arith.constant 0 : index
    %21 = vector.load %arg5[%c0_16, %c0_17, %c0_18] : memref<1x32x1xf32, #tpu.memory_space<vmem>>, vector<1x32x1xf32>
    %22 = vector.shape_cast %21 : vector<1x32x1xf32> to vector<32x1xf32>
    %23 = vector.shape_cast %20 : vector<32x1xf32> to vector<1x32x1xf32>
    tpu.vector_store %arg5[%c0_16, %c0_17, %c0_18], %23 {strides = array<i32>} : memref<1x32x1xf32, #tpu.memory_space<vmem>>, vector<1x32x1xf32>,
    return
  }
  func.func @transform_0(%arg0: i32, %arg1: i32) -> (i32, i32, i32) {
    %c0_i32 = arith.constant 0 : i32
    %c0_i32_0 = arith.constant 0 : i32
    return %arg0, %c0_i32, %arg1 : i32, i32, i32
  }
  func.func @transform_1(%arg0: i32, %arg1: i32) -> (i32, i32) {
    %c0_i32 = arith.constant 0 : i32
    %c0_i32_0 = arith.constant 0 : i32
    %c0_i32_1 = arith.constant 0 : i32
    return %c0_i32, %c0_i32_0 : i32, i32
  }
  func.func @transform_2(%arg0: i32, %arg1: i32) -> (i32, i32, i32) {
    %c0_i32 = arith.constant 0 : i32
    %c0_i32_0 = arith.constant 0 : i32
    %c0_i32_1 = arith.constant 0 : i32
    return %arg0, %c0_i32, %c0_i32_0 : i32, i32, i32
  }
  func.func @transform_3(%arg0: i32, %arg1: i32) -> (i32, i32, i32) {
    %c0_i32 = arith.constant 0 : i32
    %c0_i32_0 = arith.constant 0 : i32
    %c0_i32_1 = arith.constant 0 : i32
    return %arg0, %c0_i32, %c0_i32_0 : i32, i32, i32
  }
}

module attributes {stable_mosaic.version = 11 : i64} {
  func.func @_conv_bn_relu_kernel(%arg0: i32, %arg1: i32, %arg2: memref<1x16x64xbf16, #tpu.memory_space<vmem>>, %arg3: memref<32x16xbf16, #tpu.memory_space<vmem>>, %arg4: memref<32x1xf32, #tpu.memory_space<vmem>>, %arg5: memref<32x1xf32, #tpu.memory_space<vmem>>, %arg6: memref<1x32x64xf32, #tpu.memory_space<vmem>>) attributes {dimension_semantics = [#tpu.dimension_semantics<parallel>, #tpu.dimension_semantics<parallel>], iteration_bounds = array<i64: 2, 1>, scalar_prefetch = 0 : i64, scratch_operands = 0 : i64, tpu.core_type = #tpu.core_type<tc>, window_params = [{transform_indices = @transform_0, window_bounds = array<i64: 1, 16, 64>}, {pipeline_mode = #tpu.pipeline_mode<synchronous>, transform_indices = @transform_1, window_bounds = array<i64: 32, 16>}, {pipeline_mode = #tpu.pipeline_mode<synchronous>, transform_indices = @transform_2, window_bounds = array<i64: 32, 1>}, {pipeline_mode = #tpu.pipeline_mode<synchronous>, transform_indices = @transform_3, window_bounds = array<i64: 32, 1>}, {transform_indices = @transform_4, window_bounds = array<i64: 1, 32, 64>}]} {
    %c0 = arith.constant 0 : index
    %c0_0 = arith.constant 0 : index
    %0 = vector.load %arg3[%c0, %c0_0] : memref<32x16xbf16, #tpu.memory_space<vmem>>, vector<32x16xbf16>
    %c0_1 = arith.constant 0 : index
    %c0_2 = arith.constant 0 : index
    %c0_3 = arith.constant 0 : index
    %1 = vector.load %arg2[%c0_1, %c0_2, %c0_3] : memref<1x16x64xbf16, #tpu.memory_space<vmem>>, vector<1x16x64xbf16>
    %2 = vector.shape_cast %1 : vector<1x16x64xbf16> to vector<16x64xbf16>
    %cst = arith.constant dense<0.000000e+00> : vector<32x64xf32>
    %3 = tpu.matmul %0, %2, %cst {dimension_numbers = #tpu.dot_dimension_numbers<[1], [0], [0], [1], [0, 0, 1, 1], [], []>} : vector<32x16xbf16>, vector<16x64xbf16>, vector<32x64xf32> -> vector<32x64xf32>
    %c0_4 = arith.constant 0 : index
    %c0_5 = arith.constant 0 : index
    %4 = vector.load %arg4[%c0_4, %c0_5] : memref<32x1xf32, #tpu.memory_space<vmem>>, vector<32x1xf32>
    %5 = vector.broadcast %4 : vector<32x1xf32> to vector<32x64xf32>
    %6 = arith.mulf %3, %5 : vector<32x64xf32>
    %c0_6 = arith.constant 0 : index
    %c0_7 = arith.constant 0 : index
    %7 = vector.load %arg5[%c0_6, %c0_7] : memref<32x1xf32, #tpu.memory_space<vmem>>, vector<32x1xf32>
    %8 = vector.broadcast %7 : vector<32x1xf32> to vector<32x64xf32>
    %9 = arith.addf %6, %8 : vector<32x64xf32>
    %cst_8 = arith.constant 0.000000e+00 : f32
    %10 = vector.broadcast %cst_8 : f32 to vector<32x64xf32>
    %11 = arith.maximumf %9, %10 : vector<32x64xf32>
    %c0_9 = arith.constant 0 : index
    %c0_10 = arith.constant 0 : index
    %c0_11 = arith.constant 0 : index
    %12 = vector.load %arg6[%c0_9, %c0_10, %c0_11] : memref<1x32x64xf32, #tpu.memory_space<vmem>>, vector<1x32x64xf32>
    %13 = vector.shape_cast %12 : vector<1x32x64xf32> to vector<32x64xf32>
    %14 = vector.shape_cast %11 : vector<32x64xf32> to vector<1x32x64xf32>
    tpu.vector_store %arg6[%c0_9, %c0_10, %c0_11], %14 {strides = array<i32>} : memref<1x32x64xf32, #tpu.memory_space<vmem>>, vector<1x32x64xf32>,
    return
  }
  func.func @transform_0(%arg0: i32, %arg1: i32) -> (i32, i32, i32) {
    %c0_i32 = arith.constant 0 : i32
    %c0_i32_0 = arith.constant 0 : i32
    return %arg0, %c0_i32, %arg1 : i32, i32, i32
  }
  func.func @transform_1(%arg0: i32, %arg1: i32) -> (i32, i32) {
    %c0_i32 = arith.constant 0 : i32
    %c0_i32_0 = arith.constant 0 : i32
    %c0_i32_1 = arith.constant 0 : i32
    return %c0_i32, %c0_i32_0 : i32, i32
  }
  func.func @transform_2(%arg0: i32, %arg1: i32) -> (i32, i32) {
    %c0_i32 = arith.constant 0 : i32
    %c0_i32_0 = arith.constant 0 : i32
    %c0_i32_1 = arith.constant 0 : i32
    return %c0_i32, %c0_i32_0 : i32, i32
  }
  func.func @transform_3(%arg0: i32, %arg1: i32) -> (i32, i32) {
    %c0_i32 = arith.constant 0 : i32
    %c0_i32_0 = arith.constant 0 : i32
    %c0_i32_1 = arith.constant 0 : i32
    return %c0_i32, %c0_i32_0 : i32, i32
  }
  func.func @transform_4(%arg0: i32, %arg1: i32) -> (i32, i32, i32) {
    %c0_i32 = arith.constant 0 : i32
    %c0_i32_0 = arith.constant 0 : i32
    return %arg0, %c0_i32, %arg1 : i32, i32, i32
  }
}

</mosaic_0001>

<llo_original>
// kernel: example_network_forward.3
$region0: #{example_network_forward.3}
  #allocation0 [shape = 'u32[]', space=smem, size = 0x4, offset = 0x4, fixed_abs, tag = 'smem constant byte address 0x4 - core index']
  #allocation1 [shape = 'u32[72,128]{1,0:T(1,128)}', space=vmem, size = 0x9000, scoped, tag = 'internal scratch']
  %s0 = inlined_call_operand.vmem [shape: bf16[2,16,64], index: 0, kind: input, shape index: {}]
  %s1 = inlined_call_operand.vmem [shape: bf16[32,16], index: 1, kind: input, shape index: {}]
  %s2 = inlined_call_operand.vmem [shape: f32[32,1], index: 2, kind: input, shape index: {}]
  %s3 = inlined_call_operand.vmem [shape: f32[32,1], index: 3, kind: input, shape index: {}]
  %s4 = inlined_call_operand.vmem [shape: f32[2,32,64], index: 4, kind: output, shape index: {}]
  %s5 = sld [smem:[#allocation0]]
  $region49: #{example_network_forward.3} parent=0
    _
  %s7 = ssub.s32 1, %s5
  %s8 = scalar_select 0, %s7, %s5
  loop: start=0, step=1, limit=4
  $region2: #{example_network_forward.3} parent=0 // loop_pre_header
    _
  $region3: #{example_network_forward.3} parent=0 // loop_header
    %s10 = sphi 0, %s14
    %p11 = scmp.ge.s32.totalorder %s10, 4
    %s17 = sphi 0, %s29
    %s18 = sphi 0, %s25
    %s19 = sphi 0, %s17
    %s20 = sphi 0, %s18
    %s21 = sphi 0, %s19
    %s22 = sphi 0, %s20
    %s34 = sphi 0, %s36
    %s37 = sphi 0, %s34
    %s38 = sphi 0, %s37
    %s54 = sphi 0, %s38
    %s58 = sphi 0, %s58
    %s60 = sphi 0, %s58
    %s61 = sphi 0, %s60
    %s75 = sphi 0, %s61
    %s79 = sphi 0, %s79
    %s81 = sphi 0, %s79
    %s82 = sphi 0, %s81
    %s96 = sphi 0, %s82
    %s100 = sphi 0, %s100
    %s102 = sphi 0, %s100
    %s103 = sphi 0, %s102
    %s117 = sphi 0, %s103
    %s125 = sphi 0, %s127
    %s128 = sphi 0, %s125
    %s129 = sphi 0, %s128
    %s145 = sphi 0, %s129
  $region4: #{example_network_forward.3} parent=0 // loop_header_branch
    %13 = sbr.rel (%p11) target = $region8
  $region5: #{example_network_forward.3} parent=0 // loop_body
    %s15 = ssub.s32 %s10, 1
    %s16 = ssub.s32 %s10, 2
    %s23 = sadd.s32 1, %s18
    %p24 = scmp.ge.s32.totalorder %s23, 1
    %s25 = scalar_select %p24, 0, %s23
    %s26 = sadd.s32 1, %s17
    %s27 = scalar_select %p24, %s26, %s17
    %p28 = scmp.ge.s32.totalorder %s27, 2
    %s29 = scalar_select %p28, 0, %s27
    %s30 = ssub.s32 %s17, %s29
    %s31 = ssub.s32 %s18, %s25
    %s32 = sor.u32 %s30, %s31
    %p33 = scmp.eq.s32.totalorder %s32, 0
    %s35 = sadd.s32 %s34, 1
    %s36 = scalar_select %p33, %s34, %s35
    %p39 = pneg %p33
    %p40 = scmp.eq.s32.totalorder %s10, 1
    %p41 = por %p39, %p40
    %p42 = scmp.ne.s32.totalorder %s34, %s37
    %p43 = scmp.eq.s32.totalorder %s10, 0
    %p44 = por %p42, %p43
    %p45 = scmp.ne.s32.totalorder %s34, %s37
    %p46 = scmp.eq.s32.totalorder %s15, 1
    %p47 = por %p45, %p46
    %p48 = scmp.ne.s32.totalorder %s37, %s38
    %p49 = scmp.eq.s32.totalorder %s15, 0
    %p50 = por %p48, %p49
    %p51 = scmp.ne.s32.totalorder %s37, %s38
    %p52 = scmp.eq.s32.totalorder %s16, 1
    %p53 = por %p51, %p52
    %p55 = scmp.ne.s32.totalorder %s38, %s54
    %p56 = scmp.eq.s32.totalorder %s16, 0
    %p57 = por %p55, %p56
    %s59 = sadd.s32 %s58, 1
    %p62 = scmp.eq.s32.totalorder %s10, 1
    %p63 = scmp.ne.s32.totalorder %s58, %s60
    %p64 = scmp.eq.s32.totalorder %s10, 0
    %p65 = por %p63, %p64
    %p66 = scmp.ne.s32.totalorder %s58, %s60
    %p67 = scmp.eq.s32.totalorder %s15, 1
    %p68 = por %p66, %p67
    %p69 = scmp.ne.s32.totalorder %s60, %s61
    %p70 = scmp.eq.s32.totalorder %s15, 0
    %p71 = por %p69, %p70
    %p72 = scmp.ne.s32.totalorder %s60, %s61
    %p73 = scmp.eq.s32.totalorder %s16, 1
    %p74 = por %p72, %p73
    %p76 = scmp.ne.s32.totalorder %s61, %s75
    %p77 = scmp.eq.s32.totalorder %s16, 0
    %p78 = por %p76, %p77
    %s80 = sadd.s32 %s79, 1
    %p83 = scmp.eq.s32.totalorder %s10, 1
    %p84 = scmp.ne.s32.totalorder %s79, %s81
    %p85 = scmp.eq.s32.totalorder %s10, 0
    %p86 = por %p84, %p85
    %p87 = scmp.ne.s32.totalorder %s79, %s81
    %p88 = scmp.eq.s32.totalorder %s15, 1
    %p89 = por %p87, %p88
    %p90 = scmp.ne.s32.totalorder %s81, %s82
    %p91 = scmp.eq.s32.totalorder %s15, 0
    %p92 = por %p90, %p91
    %p93 = scmp.ne.s32.totalorder %s81, %s82
    %p94 = scmp.eq.s32.totalorder %s16, 1
    %p95 = por %p93, %p94
    %p97 = scmp.ne.s32.totalorder %s82, %s96
    %p98 = scmp.eq.s32.totalorder %s16, 0
    %p99 = por %p97, %p98
    %s101 = sadd.s32 %s100, 1
    %p104 = scmp.eq.s32.totalorder %s10, 1
    %p105 = scmp.ne.s32.totalorder %s100, %s102
    %p106 = scmp.eq.s32.totalorder %s10, 0
    %p107 = por %p105, %p106
    %p108 = scmp.ne.s32.totalorder %s100, %s102
    %p109 = scmp.eq.s32.totalorder %s15, 1
    %p110 = por %p108, %p109
    %p111 = scmp.ne.s32.totalorder %s102, %s103
    %p112 = scmp.eq.s32.totalorder %s15, 0
    %p113 = por %p111, %p112
    %p114 = scmp.ne.s32.totalorder %s102, %s103
    %p115 = scmp.eq.s32.totalorder %s16, 1
    %p116 = por %p114, %p115
    %p118 = scmp.ne.s32.totalorder %s103, %s117
    %p119 = scmp.eq.s32.totalorder %s16, 0
    %p120 = por %p118, %p119
    %s121 = ssub.s32 %s17, %s29
    %s122 = ssub.s32 %s18, %s25
    %s123 = sor.u32 %s121, %s122
    %p124 = scmp.eq.s32.totalorder %s123, 0
    %s126 = sadd.s32 %s125, 1
    %s127 = scalar_select %p124, %s125, %s126
    %p130 = pneg %p124
    %p131 = scmp.eq.s32.totalorder %s10, 1
    %p132 = por %p130, %p131
    %p133 = scmp.ne.s32.totalorder %s125, %s128
    %p134 = scmp.eq.s32.totalorder %s10, 0
    %p135 = por %p133, %p134
    %p136 = scmp.ne.s32.totalorder %s125, %s128
    %p137 = scmp.eq.s32.totalorder %s15, 1
    %p138 = por %p136, %p137
    %p139 = scmp.ne.s32.totalorder %s128, %s129
    %p140 = scmp.eq.s32.totalorder %s15, 0
    %p141 = por %p139, %p140
    %p142 = scmp.ne.s32.totalorder %s128, %s129
    %p143 = scmp.eq.s32.totalorder %s16, 1
    %p144 = por %p142, %p143
    %p146 = scmp.ne.s32.totalorder %s129, %s145
    %p147 = scmp.eq.s32.totalorder %s16, 0
    %p148 = por %p146, %p147
    %p149 = scmp.le.s32.totalorder 1, %s10
    %p150 = scmp.lt.s32.totalorder %s10, 3
    %p151 = pnand %p149, %p150
    %p152 = pneg %p151
    // Predicated region
    $region9: #{example_network_forward.3} parent=5 // pred_check
      _
    $region10: #{example_network_forward.3} parent=5 // pred_check_branch
      %154 = sbr.rel (%p151) target = $region12
    $region11: #{example_network_forward.3} parent=5 // pred_region
      %s155 = ssub.s32 %s10, 1
      // Predicated region
      $region13: #{example_network_forward.3} parent=11 // pred_check
        %p156 = pneg %p71
      $region14: #{example_network_forward.3} parent=11 // pred_check_branch
        %158 = sbr.rel (%p156) target = $region16
      $region15: #{example_network_forward.3} parent=11 // pred_region
        _
      $region16: #{example_network_forward.3} parent=11 // pred_fallthru
        _
      // Predicated region
      $region17: #{example_network_forward.3} parent=11 // pred_check
        %p159 = pneg %p92
      $region18: #{example_network_forward.3} parent=11 // pred_check_branch
        %161 = sbr.rel (%p159) target = $region20
      $region19: #{example_network_forward.3} parent=11 // pred_region
        _
      $region20: #{example_network_forward.3} parent=11 // pred_fallthru
        _
      // Predicated region
      $region21: #{example_network_forward.3} parent=11 // pred_check
        %p162 = pneg %p113
      $region22: #{example_network_forward.3} parent=11 // pred_check_branch
        %164 = sbr.rel (%p162) target = $region24
      $region23: #{example_network_forward.3} parent=11 // pred_region
        _
      $region24: #{example_network_forward.3} parent=11 // pred_fallthru
        _
    $region12: #{example_network_forward.3} parent=5 // pred_fallthru
      _
    %p165 = scmp.lt.s32.totalorder %s10, 2
    // Predicated region
    $region25: #{example_network_forward.3} parent=5 // pred_check
      %p166 = pneg %p165
    $region26: #{example_network_forward.3} parent=5 // pred_check_branch
      %168 = sbr.rel (%p166) target = $region28
    $region27: #{example_network_forward.3} parent=5 // pred_region
      // Predicated region
      $region29: #{example_network_forward.3} parent=27 // pred_check
        %p169 = pneg %p44
      $region30: #{example_network_forward.3} parent=27 // pred_check_branch
        %171 = sbr.rel (%p169) target = $region32
      $region31: #{example_network_forward.3} parent=27 // pred_region
        %p172 = scmp.lt.s32.totalorder %s17, 1
        %s173 = scalar_select %p172, %s17, 1
        %p174 = scmp.lt.s32.totalorder %s18, 0
        %s175 = scalar_select %p174, %s18, 0
        %s176 = smul.addr %s173, 2
        %s177 = sadd.s32 %s175, %s176
        %s178 = smul.addr %s177, 4
        %s179 = scalar_lea.vmem %s0, %s178
      $region32: #{example_network_forward.3} parent=27 // pred_fallthru
        _
    $region28: #{example_network_forward.3} parent=5 // pred_fallthru
      _
    %p180 = scmp.le.s32.totalorder 1, %s10
    %p181 = scmp.lt.s32.totalorder %s10, 3
    %p182 = pnand %p180, %p181
    %p183 = pneg %p182
    // Predicated region
    $region33: #{example_network_forward.3} parent=5 // pred_check
      _
    $region34: #{example_network_forward.3} parent=5 // pred_check_branch
      %185 = sbr.rel (%p182) target = $region36
    $region35: #{example_network_forward.3} parent=5 // pred_region
      %s186 = ssub.s32 %s10, 1
      %p187 = scmp.lt.s32.totalorder %s19, 1
      %s188 = scalar_select %p187, %s19, 1
      %p189 = scmp.lt.s32.totalorder %s20, 0
      %s190 = scalar_select %p189, %s20, 0
      %s191 = smul.addr %s188, 2
      %s192 = sadd.s32 %s190, %s191
      %s193 = smul.addr %s192, 4
      %s194 = scalar_lea.vmem %s0, %s193
      %p195 = pneg %p50
      %p196 = pneg %p47
      %p197 = pneg %p71
      %p198 = pneg %p68
      %p199 = pneg %p92
      %p200 = pneg %p89
      %p201 = pneg %p113
      %p202 = pneg %p110
      %p203 = pneg %p141
      %p204 = pneg %p138
      %p205 = scmp.lt.s32.totalorder %s19, 1
      %s206 = scalar_select %p205, %s19, 1
      %p207 = scmp.lt.s32.totalorder %s20, 0
      %s208 = scalar_select %p207, %s20, 0
      %s209 = smul.addr %s206, 4
      %s210 = sadd.s32 %s208, %s209
      %s211 = smul.addr %s210, 8
      %s212 = scalar_lea.vmem %s4, %s211
      %p213 = scmp.lt.s32.totalorder %s19, 1
      %s214 = scalar_select %p213, %s19, 1
      %p215 = scmp.lt.s32.totalorder %s20, 0
      %s216 = scalar_select %p215, %s20, 0
      %s217 = smul.addr %s214, 2
      %s218 = sadd.s32 %s216, %s217
      %s219 = smul.addr %s218, 4
      %s220 = scalar_lea.vmem %s0, %s219
      %p221 = scmp.lt.s32.totalorder %s19, 1
      %s222 = scalar_select %p221, %s19, 1
      %p223 = scmp.lt.s32.totalorder %s20, 0
      %s224 = scalar_select %p223, %s20, 0
      %s225 = smul.addr %s222, 4
      %s226 = sadd.s32 %s224, %s225
      %s227 = smul.addr %s226, 8
      %s228 = scalar_lea.vmem %s4, %s227
      %v230 = vld [vmem:[%s1] sm:$0xf]
      %v231 = vld [vmem:[%s1 + $0x4] sm:$0xf]
      %v232 = vld [vmem:[%s1 + $0x8] sm:$0xf]
      %v233 = vld [vmem:[%s1 + $0xc] sm:$0xf]
      %v234 = vld [vmem:[%s220] sm:$0xf]
      %v235 = vld [vmem:[%s220 + $0x4] sm:$0xf]
      %v240 = vunpack.c.l.b16 %v230
      %v241 = vunpack.c.l.b16 %v231
      %v242 = vunpack.c.l.b16 %v232
      %v243 = vunpack.c.l.b16 %v233
      %v244 = vpack.c.b16 %v241, %v240
      %v245 = vpack.c.b16 %v243, %v242
      %v248 = vunpack.c.l.b16 %v234
      %v249 = vunpack.c.l.b16 %v235
      %v250 = vpack.c.b16 %v249, %v248
      %vm252 = vcmask 130048
      %v254 = vsel %vm252, %v244, 0
      %v257 = vsel %vm252, %v245, 0
      %259 = vmatpush.bf16.msra.mxu0 0
      %260 = vmatpush.bf16.msra.mxu0 0
      %261 = vmatpush.bf16.msra.mxu0 0
      %262 = vmatpush.bf16.msra.mxu0 0
      %263 = vmatpush.bf16.msra.mxu0 0
      %264 = vmatpush.bf16.msra.mxu0 0
      %265 = vmatpush.bf16.msra.mxu0 0
      %266 = vmatpush.bf16.msra.mxu0 %v250
      %267 = vmatmul.bf16.gmra.mxu0 %v254
      %v268 = vpop.f32.mrf.mxu0
      %v269 = vadd.f32 0.0, %v268
      %v270 = vpop.f32.mrf.mxu0
      %v271 = vadd.f32 0.0, %v270
      %272 = vmatmul.bf16.gmra.mxu0 %v257
      %v273 = vpop.f32.mrf.mxu0
      %v274 = vadd.f32 0.0, %v273
      %v275 = vpop.f32.mrf.mxu0
      %v276 = vadd.f32 0.0, %v275
      %277 = vdwg.mxu0
      %v278 = vld [vmem:[%s2] sm:$0xff]
      %v279 = vld [vmem:[%s2 + $0x8] sm:$0xff]
      %v280 = vld [vmem:[%s2 + $0x10] sm:$0xff]
      %v281 = vld [vmem:[%s2 + $0x18] sm:$0xff]
      %283 = vset.pattern.permute.xlu0 0
      %284 = vperm.xlu0 %283, %v278
      %v285 = vpop.permute.xlu0 %284
      %288 = vset.pattern.permute.xlu0 0
      %289 = vperm.xlu0 %288, %v279
      %v290 = vpop.permute.xlu0 %289
      %293 = vset.pattern.permute.xlu0 0
      %294 = vperm.xlu0 %293, %v280
      %v295 = vpop.permute.xlu0 %294
      %298 = vset.pattern.permute.xlu0 0
      %299 = vperm.xlu0 %298, %v281
      %v300 = vpop.permute.xlu0 %299
      %v302 = vmul.f32 %v269, %v285
      %v303 = vmul.f32 %v271, %v290
      %v304 = vmul.f32 %v274, %v295
      %v305 = vmul.f32 %v276, %v300
      %v306 = vld [vmem:[%s3] sm:$0xff]
      %v307 = vld [vmem:[%s3 + $0x8] sm:$0xff]
      %v308 = vld [vmem:[%s3 + $0x10] sm:$0xff]
      %v309 = vld [vmem:[%s3 + $0x18] sm:$0xff]
      %311 = vset.pattern.permute.xlu0 0
      %312 = vperm.xlu0 %311, %v306
      %v313 = vpop.permute.xlu0 %312
      %316 = vset.pattern.permute.xlu0 0
      %317 = vperm.xlu0 %316, %v307
      %v318 = vpop.permute.xlu0 %317
      %321 = vset.pattern.permute.xlu0 0
      %322 = vperm.xlu0 %321, %v308
      %v323 = vpop.permute.xlu0 %322
      %326 = vset.pattern.permute.xlu0 0
      %327 = vperm.xlu0 %326, %v309
      %v328 = vpop.permute.xlu0 %327
      %v330 = vadd.f32 %v302, %v313
      %v331 = vadd.f32 %v303, %v318
      %v332 = vadd.f32 %v304, %v323
      %v333 = vadd.f32 %v305, %v328
      %v334 = vmax.f32 %v330, 0.0
      %v335 = vmax.f32 %v331, 0.0
      %v336 = vmax.f32 %v332, 0.0
      %v337 = vmax.f32 %v333, 0.0
      %vm338 = vcmask 523264
      %339 = vst.msk [vmem:[%s228] sm:$0xff] %vm338, %v334
      %340 = vst.msk [vmem:[%s228 + $0x8] sm:$0xff] %vm338, %v335
      %341 = vst.msk [vmem:[%s228 + $0x10] sm:$0xff] %vm338, %v336
      %342 = vst.msk [vmem:[%s228 + $0x18] sm:$0xff] %vm338, %v337
      %p343 = scmp.lt.s32.totalorder %s19, 1
      %s344 = scalar_select %p343, %s19, 1
      %p345 = scmp.lt.s32.totalorder %s20, 0
      %s346 = scalar_select %p345, %s20, 0
      %s347 = smul.addr %s344, 4
      %s348 = sadd.s32 %s346, %s347
      %s349 = smul.addr %s348, 8
      %s350 = scalar_lea.vmem %s4, %s349
      // Predicated region
      $region37: #{example_network_forward.3} parent=35 // pred_check
        %p351 = pneg %p138
      $region38: #{example_network_forward.3} parent=35 // pred_check_branch
        %353 = sbr.rel (%p351) target = $region40
      $region39: #{example_network_forward.3} parent=35 // pred_region
        _
      $region40: #{example_network_forward.3} parent=35 // pred_fallthru
        _
    $region36: #{example_network_forward.3} parent=5 // pred_fallthru
      _
    %p354 = scmp.le.s32.totalorder 2, %s10
    // Predicated region
    $region41: #{example_network_forward.3} parent=5 // pred_check
      %p355 = pneg %p354
    $region42: #{example_network_forward.3} parent=5 // pred_check_branch
      %357 = sbr.rel (%p355) target = $region44
    $region43: #{example_network_forward.3} parent=5 // pred_region
      %s358 = ssub.s32 %s10, 2
      // Predicated region
      $region45: #{example_network_forward.3} parent=43 // pred_check
        %p359 = pneg %p144
      $region46: #{example_network_forward.3} parent=43 // pred_check_branch
        %361 = sbr.rel (%p359) target = $region48
      $region47: #{example_network_forward.3} parent=43 // pred_region
        %p362 = scmp.lt.s32.totalorder %s21, 1
        %s363 = scalar_select %p362, %s21, 1
        %p364 = scmp.lt.s32.totalorder %s22, 0
        %s365 = scalar_select %p364, %s22, 0
        %s366 = smul.addr %s363, 4
        %s367 = sadd.s32 %s365, %s366
        %s368 = smul.addr %s367, 8
        %s369 = scalar_lea.vmem %s4, %s368
      $region48: #{example_network_forward.3} parent=43 // pred_fallthru
        _
    $region44: #{example_network_forward.3} parent=5 // pred_fallthru
      _
  $region6: #{example_network_forward.3} parent=0 // loop_footer
    %s14 = sadd.s32 1, %s10
  $region7: #{example_network_forward.3} parent=0 // loop_footer_branch
    %9 = sbr.rel target = $region3
  $region8: #{example_network_forward.3} parent=0 // loop_exit
    _

// kernel: example_network_forward.2
$region0: #{example_network_forward.2}
  #allocation0 [shape = 'u32[]', space=smem, size = 0x4, offset = 0x4, fixed_abs, tag = 'smem constant byte address 0x4 - core index']
  #allocation1 [shape = 'u32[72,128]{1,0:T(1,128)}', space=vmem, size = 0x9000, scoped, tag = 'internal scratch']
  %s0 = inlined_call_operand.vmem [shape: bf16[2,16,64], index: 0, kind: input, shape index: {}]
  %s1 = inlined_call_operand.vmem [shape: bf16[32,16], index: 1, kind: input, shape index: {}]
  %s2 = inlined_call_operand.vmem [shape: f32[2,32,1], index: 2, kind: output, shape index: {0}]
  %s3 = inlined_call_operand.vmem [shape: f32[2,32,1], index: 3, kind: output, shape index: {1}]
  %4 = xla_tuple %s2, %s3
  %s5 = sld [smem:[#allocation0]]
  $region53: #{example_network_forward.2} parent=0
    _
  %s7 = ssub.s32 1, %s5
  %s8 = scalar_select 0, %s7, %s5
  loop: start=0, step=1, limit=4
  $region2: #{example_network_forward.2} parent=0 // loop_pre_header
    _
  $region3: #{example_network_forward.2} parent=0 // loop_header
    %s10 = sphi 0, %s14
    %p11 = scmp.ge.s32.totalorder %s10, 4
    %s17 = sphi 0, %s29
    %s18 = sphi 0, %s25
    %s19 = sphi 0, %s17
    %s20 = sphi 0, %s18
    %s21 = sphi 0, %s19
    %s22 = sphi 0, %s20
    %s34 = sphi 0, %s36
    %s37 = sphi 0, %s34
    %s38 = sphi 0, %s37
    %s54 = sphi 0, %s38
    %s58 = sphi 0, %s58
    %s60 = sphi 0, %s58
    %s61 = sphi 0, %s60
    %s75 = sphi 0, %s61
    %s81 = sphi 0, %s83
    %s84 = sphi 0, %s81
    %s85 = sphi 0, %s84
    %s101 = sphi 0, %s85
    %s107 = sphi 0, %s109
    %s110 = sphi 0, %s107
    %s111 = sphi 0, %s110
    %s127 = sphi 0, %s111
  $region4: #{example_network_forward.2} parent=0 // loop_header_branch
    %13 = sbr.rel (%p11) target = $region8
  $region5: #{example_network_forward.2} parent=0 // loop_body
    %s15 = ssub.s32 %s10, 1
    %s16 = ssub.s32 %s10, 2
    %s23 = sadd.s32 1, %s18
    %p24 = scmp.ge.s32.totalorder %s23, 1
    %s25 = scalar_select %p24, 0, %s23
    %s26 = sadd.s32 1, %s17
    %s27 = scalar_select %p24, %s26, %s17
    %p28 = scmp.ge.s32.totalorder %s27, 2
    %s29 = scalar_select %p28, 0, %s27
    %s30 = ssub.s32 %s17, %s29
    %s31 = ssub.s32 %s18, %s25
    %s32 = sor.u32 %s30, %s31
    %p33 = scmp.eq.s32.totalorder %s32, 0
    %s35 = sadd.s32 %s34, 1
    %s36 = scalar_select %p33, %s34, %s35
    %p39 = pneg %p33
    %p40 = scmp.eq.s32.totalorder %s10, 1
    %p41 = por %p39, %p40
    %p42 = scmp.ne.s32.totalorder %s34, %s37
    %p43 = scmp.eq.s32.totalorder %s10, 0
    %p44 = por %p42, %p43
    %p45 = scmp.ne.s32.totalorder %s34, %s37
    %p46 = scmp.eq.s32.totalorder %s15, 1
    %p47 = por %p45, %p46
    %p48 = scmp.ne.s32.totalorder %s37, %s38
    %p49 = scmp.eq.s32.totalorder %s15, 0
    %p50 = por %p48, %p49
    %p51 = scmp.ne.s32.totalorder %s37, %s38
    %p52 = scmp.eq.s32.totalorder %s16, 1
    %p53 = por %p51, %p52
    %p55 = scmp.ne.s32.totalorder %s38, %s54
    %p56 = scmp.eq.s32.totalorder %s16, 0
    %p57 = por %p55, %p56
    %s59 = sadd.s32 %s58, 1
    %p62 = scmp.eq.s32.totalorder %s10, 1
    %p63 = scmp.ne.s32.totalorder %s58, %s60
    %p64 = scmp.eq.s32.totalorder %s10, 0
    %p65 = por %p63, %p64
    %p66 = scmp.ne.s32.totalorder %s58, %s60
    %p67 = scmp.eq.s32.totalorder %s15, 1
    %p68 = por %p66, %p67
    %p69 = scmp.ne.s32.totalorder %s60, %s61
    %p70 = scmp.eq.s32.totalorder %s15, 0
    %p71 = por %p69, %p70
    %p72 = scmp.ne.s32.totalorder %s60, %s61
    %p73 = scmp.eq.s32.totalorder %s16, 1
    %p74 = por %p72, %p73
    %p76 = scmp.ne.s32.totalorder %s61, %s75
    %p77 = scmp.eq.s32.totalorder %s16, 0
    %p78 = por %p76, %p77
    %s79 = ssub.s32 %s17, %s29
    %p80 = scmp.eq.s32.totalorder %s79, 0
    %s82 = sadd.s32 %s81, 1
    %s83 = scalar_select %p80, %s81, %s82
    %p86 = pneg %p80
    %p87 = scmp.eq.s32.totalorder %s10, 1
    %p88 = por %p86, %p87
    %p89 = scmp.ne.s32.totalorder %s81, %s84
    %p90 = scmp.eq.s32.totalorder %s10, 0
    %p91 = por %p89, %p90
    %p92 = scmp.ne.s32.totalorder %s81, %s84
    %p93 = scmp.eq.s32.totalorder %s15, 1
    %p94 = por %p92, %p93
    %p95 = scmp.ne.s32.totalorder %s84, %s85
    %p96 = scmp.eq.s32.totalorder %s15, 0
    %p97 = por %p95, %p96
    %p98 = scmp.ne.s32.totalorder %s84, %s85
    %p99 = scmp.eq.s32.totalorder %s16, 1
    %p100 = por %p98, %p99
    %p102 = scmp.ne.s32.totalorder %s85, %s101
    %p103 = scmp.eq.s32.totalorder %s16, 0
    %p104 = por %p102, %p103
    %s105 = ssub.s32 %s17, %s29
    %p106 = scmp.eq.s32.totalorder %s105, 0
    %s108 = sadd.s32 %s107, 1
    %s109 = scalar_select %p106, %s107, %s108
    %p112 = pneg %p106
    %p113 = scmp.eq.s32.totalorder %s10, 1
    %p114 = por %p112, %p113
    %p115 = scmp.ne.s32.totalorder %s107, %s110
    %p116 = scmp.eq.s32.totalorder %s10, 0
    %p117 = por %p115, %p116
    %p118 = scmp.ne.s32.totalorder %s107, %s110
    %p119 = scmp.eq.s32.totalorder %s15, 1
    %p120 = por %p118, %p119
    %p121 = scmp.ne.s32.totalorder %s110, %s111
    %p122 = scmp.eq.s32.totalorder %s15, 0
    %p123 = por %p121, %p122
    %p124 = scmp.ne.s32.totalorder %s110, %s111
    %p125 = scmp.eq.s32.totalorder %s16, 1
    %p126 = por %p124, %p125
    %p128 = scmp.ne.s32.totalorder %s111, %s127
    %p129 = scmp.eq.s32.totalorder %s16, 0
    %p130 = por %p128, %p129
    %p131 = scmp.le.s32.totalorder 1, %s10
    %p132 = scmp.lt.s32.totalorder %s10, 3
    %p133 = pnand %p131, %p132
    %p134 = pneg %p133
    // Predicated region
    $region9: #{example_network_forward.2} parent=5 // pred_check
      _
    $region10: #{example_network_forward.2} parent=5 // pred_check_branch
      %136 = sbr.rel (%p133) target = $region12
    $region11: #{example_network_forward.2} parent=5 // pred_region
      %s137 = ssub.s32 %s10, 1
      // Predicated region
      $region13: #{example_network_forward.2} parent=11 // pred_check
        %p138 = pneg %p71
      $region14: #{example_network_forward.2} parent=11 // pred_check_branch
        %140 = sbr.rel (%p138) target = $region16
      $region15: #{example_network_forward.2} parent=11 // pred_region
        _
      $region16: #{example_network_forward.2} parent=11 // pred_fallthru
        _
    $region12: #{example_network_forward.2} parent=5 // pred_fallthru
      _
    %p141 = scmp.lt.s32.totalorder %s10, 2
    // Predicated region
    $region17: #{example_network_forward.2} parent=5 // pred_check
      %p142 = pneg %p141
    $region18: #{example_network_forward.2} parent=5 // pred_check_branch
      %144 = sbr.rel (%p142) target = $region20
    $region19: #{example_network_forward.2} parent=5 // pred_region
      // Predicated region
      $region21: #{example_network_forward.2} parent=19 // pred_check
        %p145 = pneg %p44
      $region22: #{example_network_forward.2} parent=19 // pred_check_branch
        %147 = sbr.rel (%p145) target = $region24
      $region23: #{example_network_forward.2} parent=19 // pred_region
        %p148 = scmp.lt.s32.totalorder %s17, 1
        %s149 = scalar_select %p148, %s17, 1
        %p150 = scmp.lt.s32.totalorder %s18, 0
        %s151 = scalar_select %p150, %s18, 0
        %s152 = smul.addr %s149, 2
        %s153 = sadd.s32 %s151, %s152
        %s154 = smul.addr %s153, 4
        %s155 = scalar_lea.vmem %s0, %s154
      $region24: #{example_network_forward.2} parent=19 // pred_fallthru
        _
    $region20: #{example_network_forward.2} parent=5 // pred_fallthru
      _
    %p156 = scmp.le.s32.totalorder 1, %s10
    %p157 = scmp.lt.s32.totalorder %s10, 3
    %p158 = pnand %p156, %p157
    %p159 = pneg %p158
    // Predicated region
    $region25: #{example_network_forward.2} parent=5 // pred_check
      _
    $region26: #{example_network_forward.2} parent=5 // pred_check_branch
      %161 = sbr.rel (%p158) target = $region28
    $region27: #{example_network_forward.2} parent=5 // pred_region
      %s162 = ssub.s32 %s10, 1
      %p163 = scmp.lt.s32.totalorder %s19, 1
      %s164 = scalar_select %p163, %s19, 1
      %p165 = scmp.lt.s32.totalorder %s20, 0
      %s166 = scalar_select %p165, %s20, 0
      %s167 = smul.addr %s164, 2
      %s168 = sadd.s32 %s166, %s167
      %s169 = smul.addr %s168, 4
      %s170 = scalar_lea.vmem %s0, %s169
      %p171 = pneg %p50
      %p172 = pneg %p47
      %p173 = pneg %p71
      %p174 = pneg %p68
      %p175 = pneg %p97
      %p176 = pneg %p94
      %p177 = scmp.lt.s32.totalorder %s19, 1
      %s178 = scalar_select %p177, %s19, 1
      %s179 = smul.addr %s178, 4
      %s180 = smul.addr %s179, 8
      %s181 = scalar_lea.vmem %s2, %s180
      %p182 = pneg %p123
      %p183 = pneg %p120
      %p184 = scmp.lt.s32.totalorder %s19, 1
      %s185 = scalar_select %p184, %s19, 1
      %s186 = smul.addr %s185, 4
      %s187 = smul.addr %s186, 8
      %s188 = scalar_lea.vmem %s3, %s187
      %p189 = scmp.lt.s32.totalorder %s19, 1
      %s190 = scalar_select %p189, %s19, 1
      %p191 = scmp.lt.s32.totalorder %s20, 0
      %s192 = scalar_select %p191, %s20, 0
      %s193 = smul.addr %s190, 2
      %s194 = sadd.s32 %s192, %s193
      %s195 = smul.addr %s194, 4
      %s196 = scalar_lea.vmem %s0, %s195
      %p197 = scmp.lt.s32.totalorder %s19, 1
      %s198 = scalar_select %p197, %s19, 1
      %s199 = smul.addr %s198, 4
      %s200 = smul.addr %s199, 8
      %s201 = scalar_lea.vmem %s2, %s200
      %p202 = scmp.lt.s32.totalorder %s19, 1
      %s203 = scalar_select %p202, %s19, 1
      %s204 = smul.addr %s203, 4
      %s205 = smul.addr %s204, 8
      %s206 = scalar_lea.vmem %s3, %s205
      %p208 = scmp.eq.s32.totalorder %s20, 0
      // Predicated region
      $region29: #{example_network_forward.2} parent=27 // pred_check
        %p209 = pneg %p208
      $region30: #{example_network_forward.2} parent=27 // pred_check_branch
        %211 = sbr.rel (%p209) target = $region32
      $region31: #{example_network_forward.2} parent=27 // pred_region
        %vm212 = vcmask 7168
        %213 = vst.msk [vmem:[%s201] sm:$0xff] %vm212, 0.0
        %214 = vst.msk [vmem:[%s201 + $0x8] sm:$0xff] %vm212, 0.0
        %215 = vst.msk [vmem:[%s201 + $0x10] sm:$0xff] %vm212, 0.0
        %216 = vst.msk [vmem:[%s201 + $0x18] sm:$0xff] %vm212, 0.0
        %217 = vst.msk [vmem:[%s206] sm:$0xff] %vm212, 0.0
        %218 = vst.msk [vmem:[%s206 + $0x8] sm:$0xff] %vm212, 0.0
        %219 = vst.msk [vmem:[%s206 + $0x10] sm:$0xff] %vm212, 0.0
        %220 = vst.msk [vmem:[%s206 + $0x18] sm:$0xff] %vm212, 0.0
      $region32: #{example_network_forward.2} parent=27 // pred_fallthru
        _
      %v221 = vld [vmem:[%s1] sm:$0xf]
      %v222 = vld [vmem:[%s1 + $0x4] sm:$0xf]
      %v223 = vld [vmem:[%s1 + $0x8] sm:$0xf]
      %v224 = vld [vmem:[%s1 + $0xc] sm:$0xf]
      %v225 = vld [vmem:[%s196] sm:$0xf]
      %v226 = vld [vmem:[%s196 + $0x4] sm:$0xf]
      %v231 = vunpack.c.l.b16 %v221
      %v232 = vunpack.c.l.b16 %v222
      %v233 = vunpack.c.l.b16 %v223
      %v234 = vunpack.c.l.b16 %v224
      %v235 = vpack.c.b16 %v232, %v231
      %v236 = vpack.c.b16 %v234, %v233
      %v239 = vunpack.c.l.b16 %v225
      %v240 = vunpack.c.l.b16 %v226
      %v241 = vpack.c.b16 %v240, %v239
      %vm243 = vcmask 130048
      %v245 = vsel %vm243, %v235, 0
      %v248 = vsel %vm243, %v236, 0
      %250 = vmatpush.bf16.msra.mxu0 0
      %251 = vmatpush.bf16.msra.mxu0 0
      %252 = vmatpush.bf16.msra.mxu0 0
      %253 = vmatpush.bf16.msra.mxu0 0
      %254 = vmatpush.bf16.msra.mxu0 0
      %255 = vmatpush.bf16.msra.mxu0 0
      %256 = vmatpush.bf16.msra.mxu0 0
      %257 = vmatpush.bf16.msra.mxu0 %v241
      %258 = vmatmul.bf16.gmra.mxu0 %v245
      %v259 = vpop.f32.mrf.mxu0
      %v260 = vadd.f32 0.0, %v259
      %v261 = vpop.f32.mrf.mxu0
      %v262 = vadd.f32 0.0, %v261
      %263 = vmatmul.bf16.gmra.mxu0 %v248
      %v264 = vpop.f32.mrf.mxu0
      %v265 = vadd.f32 0.0, %v264
      %v266 = vpop.f32.mrf.mxu0
      %v267 = vadd.f32 0.0, %v266
      %268 = vdwg.mxu0
      %v269 = vld [vmem:[%s201] sm:$0xff]
      %v270 = vld [vmem:[%s201 + $0x8] sm:$0xff]
      %v271 = vld [vmem:[%s201 + $0x10] sm:$0xff]
      %v272 = vld [vmem:[%s201 + $0x18] sm:$0xff]
      %vm273 = vcmask 523264
      %v274 = vsel %vm273, %v260, 0.0
      %275 = vadd.xlane.f32.xlu0 %v274
      %v276 = vpop.xlane.xlu0 %275
      %v277 = vsel %vm273, %v262, 0.0
      %278 = vadd.xlane.f32.xlu0 %v277
      %v279 = vpop.xlane.xlu0 %278
      %v280 = vsel %vm273, %v265, 0.0
      %281 = vadd.xlane.f32.xlu0 %v280
      %v282 = vpop.xlane.xlu0 %281
      %v283 = vsel %vm273, %v267, 0.0
      %284 = vadd.xlane.f32.xlu0 %v283
      %v285 = vpop.xlane.xlu0 %284
      %v286 = vadd.f32 %v269, %v276
      %v287 = vadd.f32 %v270, %v279
      %v288 = vadd.f32 %v271, %v282
      %v289 = vadd.f32 %v272, %v285
      %vm290 = vcmask 7168
      %291 = vst.msk [vmem:[%s201] sm:$0xff] %vm290, %v286
      %292 = vst.msk [vmem:[%s201 + $0x8] sm:$0xff] %vm290, %v287
      %293 = vst.msk [vmem:[%s201 + $0x10] sm:$0xff] %vm290, %v288
      %294 = vst.msk [vmem:[%s201 + $0x18] sm:$0xff] %vm290, %v289
      %v295 = vld [vmem:[%s206] sm:$0xff]
      %v296 = vld [vmem:[%s206 + $0x8] sm:$0xff]
      %v297 = vld [vmem:[%s206 + $0x10] sm:$0xff]
      %v298 = vld [vmem:[%s206 + $0x18] sm:$0xff]
      %v299 = vmul.f32 %v260, %v260
      %v300 = vmul.f32 %v262, %v262
      %v301 = vmul.f32 %v265, %v265
      %v302 = vmul.f32 %v267, %v267
      %v303 = vsel %vm273, %v299, 0.0
      %304 = vadd.xlane.f32.xlu0 %v303
      %v305 = vpop.xlane.xlu0 %304
      %v306 = vsel %vm273, %v300, 0.0
      %307 = vadd.xlane.f32.xlu0 %v306
      %v308 = vpop.xlane.xlu0 %307
      %v309 = vsel %vm273, %v301, 0.0
      %310 = vadd.xlane.f32.xlu0 %v309
      %v311 = vpop.xlane.xlu0 %310
      %v312 = vsel %vm273, %v302, 0.0
      %313 = vadd.xlane.f32.xlu0 %v312
      %v314 = vpop.xlane.xlu0 %313
      %v315 = vadd.f32 %v295, %v305
      %v316 = vadd.f32 %v296, %v308
      %v317 = vadd.f32 %v297, %v311
      %v318 = vadd.f32 %v298, %v314
      %319 = vst.msk [vmem:[%s206] sm:$0xff] %vm290, %v315
      %320 = vst.msk [vmem:[%s206 + $0x8] sm:$0xff] %vm290, %v316
      %321 = vst.msk [vmem:[%s206 + $0x10] sm:$0xff] %vm290, %v317
      %322 = vst.msk [vmem:[%s206 + $0x18] sm:$0xff] %vm290, %v318
      %p323 = scmp.lt.s32.totalorder %s19, 1
      %s324 = scalar_select %p323, %s19, 1
      %s325 = smul.addr %s324, 4
      %s326 = smul.addr %s325, 8
      %s327 = scalar_lea.vmem %s2, %s326
      %p328 = scmp.lt.s32.totalorder %s19, 1
      %s329 = scalar_select %p328, %s19, 1
      %s330 = smul.addr %s329, 4
      %s331 = smul.addr %s330, 8
      %s332 = scalar_lea.vmem %s3, %s331
      // Predicated region
      $region33: #{example_network_forward.2} parent=27 // pred_check
        %p333 = pneg %p94
      $region34: #{example_network_forward.2} parent=27 // pred_check_branch
        %335 = sbr.rel (%p333) target = $region36
      $region35: #{example_network_forward.2} parent=27 // pred_region
        _
      $region36: #{example_network_forward.2} parent=27 // pred_fallthru
        _
      // Predicated region
      $region37: #{example_network_forward.2} parent=27 // pred_check
        %p336 = pneg %p120
      $region38: #{example_network_forward.2} parent=27 // pred_check_branch
        %338 = sbr.rel (%p336) target = $region40
      $region39: #{example_network_forward.2} parent=27 // pred_region
        _
      $region40: #{example_network_forward.2} parent=27 // pred_fallthru
        _
    $region28: #{example_network_forward.2} parent=5 // pred_fallthru
      _
    %p339 = scmp.le.s32.totalorder 2, %s10
    // Predicated region
    $region41: #{example_network_forward.2} parent=5 // pred_check
      %p340 = pneg %p339
    $region42: #{example_network_forward.2} parent=5 // pred_check_branch
      %342 = sbr.rel (%p340) target = $region44
    $region43: #{example_network_forward.2} parent=5 // pred_region
      %s343 = ssub.s32 %s10, 2
      // Predicated region
      $region45: #{example_network_forward.2} parent=43 // pred_check
        %p344 = pneg %p100
      $region46: #{example_network_forward.2} parent=43 // pred_check_branch
        %346 = sbr.rel (%p344) target = $region48
      $region47: #{example_network_forward.2} parent=43 // pred_region
        %p347 = scmp.lt.s32.totalorder %s21, 1
        %s348 = scalar_select %p347, %s21, 1
        %s349 = smul.addr %s348, 4
        %s350 = smul.addr %s349, 8
        %s351 = scalar_lea.vmem %s2, %s350
      $region48: #{example_network_forward.2} parent=43 // pred_fallthru
        _
      // Predicated region
      $region49: #{example_network_forward.2} parent=43 // pred_check
        %p352 = pneg %p126
      $region50: #{example_network_forward.2} parent=43 // pred_check_branch
        %354 = sbr.rel (%p352) target = $region52
      $region51: #{example_network_forward.2} parent=43 // pred_region
        %p355 = scmp.lt.s32.totalorder %s21, 1
        %s356 = scalar_select %p355, %s21, 1
        %s357 = smul.addr %s356, 4
        %s358 = smul.addr %s357, 8
        %s359 = scalar_lea.vmem %s3, %s358
      $region52: #{example_network_forward.2} parent=43 // pred_fallthru
        _
    $region44: #{example_network_forward.2} parent=5 // pred_fallthru
      _
  $region6: #{example_network_forward.2} parent=0 // loop_footer
    %s14 = sadd.s32 1, %s10
  $region7: #{example_network_forward.2} parent=0 // loop_footer_branch
    %9 = sbr.rel target = $region3
  $region8: #{example_network_forward.2} parent=0 // loop_exit
    _

</llo_original>
